<compile_context>
chip_gen: v5e
topology: v5e:2x2
jax: 0.10.0
libtpu: 0.0.40
codegen_flags: <defaults>
</compile_context>

<pallas_src>
import jax
import jax.numpy as jnp
from jax import lax
from jax.experimental import pallas as pl
from jax.experimental.pallas import tpu as pltpu


# ----------------------------------------------------------------------------
# Fused Pallas kernel (one image per grid step)
# ----------------------------------------------------------------------------
def _make_router_kernel(has0, has2, c1, n_main, cin, S, tap_starts, out_dtype):
    """Kernel refs (in order):
         x_ref  : (Cin, S3)     f32  zero-padded image, channel-major, rows flattened
         w_ref  : (Ctot, 9*Cin) bf16 all branches' weights, BN scale folded
         b_ref  : (Ctot, 1)     f32  folded BN bias
         sc_ref : (4*C0, S)     f32  border-clamp fixup for folded upsample      [has0]
         o1_ref : (C,  S)       bf16 stride-1 3x3 output (channel-major, lane-dense)
         o2_ref : (2C, S)       bf16 dense result of the stride-2 weights        [has2]
         op_ref : (4*C0, S)     bf16 four upsample phases of postprocess0        [has0]
         p_ref  : (9*Cin, S)    f32  VMEM scratch: im2col patch matrix
    """

    def kernel(*refs):
        it = iter(refs)
        x_ref = next(it)
        w_ref = next(it)
        b_ref = next(it)
        sc_ref = next(it) if has0 else None
        o1_ref = next(it)
        o2_ref = next(it) if has2 else None
        op_ref = next(it) if has0 else None
        p_ref = next(it)

        # im2col: 9 shifted copies of the flattened padded image -> (9*Cin, S).
        for t, start in enumerate(tap_starts):
            p_ref[t * cin:(t + 1) * cin, :] = x_ref[:, start:start + S]

        # One MXU dot for every branch (incl. the 4 folded upsample phases).
        acc = jnp.dot(w_ref[...], p_ref[...].astype(jnp.bfloat16),
                      preferred_element_type=jnp.float32)            # (Ctot, S) f32
        bias = b_ref[...]

        main = acc[:n_main, :] + bias[:n_main, :]
        o1_ref[...] = main[:c1, :].astype(out_dtype)
        if has2:
            o2_ref[...] = main[c1:, :].astype(out_dtype)
        if has0:
            ph = acc[n_main:, :] * sc_ref[...] + bias[n_main:, :]
            op_ref[...] = ph.astype(out_dtype)

    return kernel


# ----------------------------------------------------------------------------
# Bilinear 2x upsample (reference-only; matches nn.Upsample(scale_factor=2,
# mode='bilinear', align_corners=False) exactly)
# ----------------------------------------------------------------------------
def _upsample1d_x2(x, axis):
    n = x.shape[axis]
    idx = jnp.arange(n)
    left = jnp.take(x, jnp.clip(idx - 1, 0, n - 1), axis=axis)
    right = jnp.take(x, jnp.clip(idx + 1, 0, n - 1), axis=axis)
    even = 0.75 * x + 0.25 * left
    odd = 0.75 * x + 0.25 * right
    out = jnp.stack([even, odd], axis=axis + 1)
    shp = list(x.shape)
    shp[axis] = 2 * n
    return out.reshape(shp)


# ----------------------------------------------------------------------------
# Parameter construction (deterministic, synthetic; inference-mode BN folded)
# ----------------------------------------------------------------------------
def _fold_bn(gamma, beta, mean, var, eps=1e-5):
    scale = gamma / jnp.sqrt(var + eps)
    bias = beta - mean * scale
    return scale, bias


def _make_bn_params(key, c):
    k1, k2, k3, k4 = jax.random.split(key, 4)
    gamma = 1.0 + 0.1 * jax.random.normal(k1, (c,), jnp.float32)
    beta = 0.1 * jax.random.normal(k2, (c,), jnp.float32)
    mean = 0.1 * jax.random.normal(k3, (c,), jnp.float32)
    var = 1.0 + 0.5 * jax.random.uniform(k4, (c,), jnp.float32)
    return _fold_bn(gamma, beta, mean, var)


class RouterPallas:
    """JAX/Pallas port of Router (inference).  All branches share one im2col MXU dot."""

    def __init__(self, ind, inp, C, num_strides=4, key=jax.random.PRNGKey(0)):
        self.ind = ind
        self.num_strides = num_strides
        self.inp = inp
        self.has0 = ind > 0
        self.has2 = ind < num_strides - 1
        self.c0, self.c1, self.c2 = C // 2, C, 2 * C

        keys = jax.random.split(key, 6)
        rows, biases = [], []

        # postprocess1: conv3x3(stride 1) + BN  -> C channels
        w1 = 0.1 * jax.random.normal(keys[2], (self.c1, inp, 3, 3), jnp.float32)
        s1, b1 = _make_bn_params(keys[3], self.c1)
        rows.append(jnp.transpose(w1 * s1[:, None, None, None], (0, 2, 3, 1))
                    .reshape(self.c1, 9 * inp))
        biases.append(b1)

        # postprocess2: conv3x3(stride 2) + BN  -> 2C channels (computed densely)
        if self.has2:
            w2 = 0.1 * jax.random.normal(keys[4], (self.c2, inp, 3, 3), jnp.float32)
            s2, b2 = _make_bn_params(keys[5], self.c2)
            rows.append(jnp.transpose(w2 * s2[:, None, None, None], (0, 2, 3, 1))
                        .reshape(self.c2, 9 * inp))
            biases.append(b2)

        # postprocess0: 2x bilinear upsample + conv1x1 + BN -> C/2 channels,
        # folded into 4 "phase" weight blocks over the 3x3 taps.
        if self.has0:
            w0 = 0.1 * jax.random.normal(keys[0], (self.c0, inp), jnp.float32)
            s0, b0 = _make_bn_params(keys[1], self.c0)
            w0s = w0 * s0[:, None]                                   # (C0, Cin)
            # 1-D bilinear x2 stencils over taps {0,1,2} (zero-padded):
            #   phase 0 -> 0.25*x[-1] + 0.75*x[0];  phase 1 -> 0.75*x[0] + 0.25*x[+1]
            st = jnp.array([[0.25, 0.75, 0.0], [0.0, 0.75, 0.25]], jnp.float32)
            coef = jnp.einsum('ay,bx->abyx', st, st).reshape(4, 3, 3)   # p = 2a + b
            wph = coef[:, None, :, :, None] * w0s[None, :, None, None, :]
            rows.append(wph.reshape(4 * self.c0, 9 * inp))
            biases.append(jnp.tile(b0, 4))
            self.w0k = w0s.astype(jnp.bfloat16)          # for the reference check
            self.b0 = b0

        self.wbig = jnp.concatenate(rows, axis=0).astype(jnp.bfloat16)    # (Ctot, 9*Cin)
        self.bbig = jnp.concatenate(biases)[:, None].astype(jnp.float32)  # (Ctot, 1)

        self._forward = jax.jit(self._forward_impl)

    # -------------------------------------------------------------------- #
    def _forward_impl(self, x_nchw):
        N, Cin, H, W = x_nchw.shape
        c0, c1, c2 = self.c0, self.c1, self.c2
        has0, has2 = self.has0, self.has2
        Wp = W + 2                       # padded width (flattened-padding trick)
        S = H * Wp                       # flattened spatial extent of one output slab
        S3 = (H + 3) * Wp                # flattened padded input
        K9 = 9 * Cin
        n_main = c1 + (c2 if has2 else 0)
        n_ph = 4 * c0 if has0 else 0
        Ctot = n_main + n_ph
        bf16 = jnp.bfloat16

        # Zero-pad H by (1,2), W by (1,1); stay channel-major (no transpose) and flatten
        # rows so every 3x3 tap is a contiguous slice of the lane axis.
        xflat = jnp.pad(x_nchw, ((0, 0), (0, 0), (1, 2), (1, 1))).reshape(N, Cin, S3)
        tap_starts = [dy * Wp + dx for dy in range(3) for dx in range(3)]

        inputs = [xflat, self.wbig, self.bbig]
        in_specs = [pl.BlockSpec((None, Cin, S3), lambda n: (n, 0, 0)),
                    pl.BlockSpec((Ctot, K9), lambda n: (0, 0)),
                    pl.BlockSpec((Ctot, 1), lambda n: (0, 0))]
        if has0:
            # Exact fixup for torch's clamped bilinear border vs. our zero-padded taps.
            hi = jnp.arange(H)[:, None]
            wi = jnp.arange(Wp)[None, :]
            g = 4.0 / 3.0
            ph_sc = []
            for a in (0, 1):
                for b in (0, 1):
                    r = jnp.where(hi == (0 if a == 0 else H - 1), g, 1.0)
                    c = jnp.where(wi == (0 if b == 0 else W - 1), g, 1.0)
                    ph_sc.append((r * c).reshape(-1))
            scale = jnp.repeat(jnp.stack(ph_sc), c0, axis=0).astype(jnp.float32)
            inputs.append(scale)                                       # (4*C0, S)
            in_specs.append(pl.BlockSpec((n_ph, S), lambda n: (0, 0)))

        out_shapes = [jax.ShapeDtypeStruct((N, c1, S), bf16)]
        out_specs = [pl.BlockSpec((None, c1, S), lambda n: (n, 0, 0))]
        if has2:
            out_shapes.append(jax.ShapeDtypeStruct((N, c2, S), bf16))
            out_specs.append(pl.BlockSpec((None, c2, S), lambda n: (n, 0, 0)))
        if has0:
            out_shapes.append(jax.ShapeDtypeStruct((N, n_ph, S), bf16))
            out_specs.append(pl.BlockSpec((None, n_ph, S), lambda n: (n, 0, 0)))

        kernel = _make_router_kernel(has0, has2, c1, n_main, Cin, S, tap_starts, bf16)

        # VMEM: double-buffered in/out blocks + im2col scratch + headroom.
        blk_bytes = (Cin * S3 * 4 + Ctot * K9 * 2 + Ctot * 4 + n_ph * S * 4
                     + Ctot * S * 2)
        vmem_limit = int(max(4 << 20, 2 * blk_bytes + K9 * S * 4 + (1 << 20)))

        outs = pl.pallas_call(
            kernel,
            out_shape=tuple(out_shapes),
            grid_spec=pltpu.PrefetchScalarGridSpec(
                num_scalar_prefetch=0,
                grid=(N,),
                in_specs=in_specs,
                out_specs=tuple(out_specs),
                scratch_shapes=[pltpu.VMEM((K9, S), jnp.float32)]),
            compiler_params=pltpu.CompilerParams(
                dimension_semantics=("parallel",),
                vmem_limit_bytes=vmem_limit),
        )(*inputs)
        if not isinstance(outs, (tuple, list)):
            outs = (outs,)

        idx = 0
        o1 = outs[idx]; idx += 1
        h1 = o1.reshape(N, c1, H, Wp)[:, :, :, :W].astype(jnp.float32)
        h2 = None
        if has2:
            o2 = outs[idx]; idx += 1
            h2 = o2.reshape(N, c2, H, Wp)[:, :, 0:H:2, 0:W:2].astype(jnp.float32)
        h0 = None
        if has0:
            oph = outs[idx]; idx += 1
            ph = oph.reshape(N, 2, 2, c0, H, Wp)[..., :W]        # (N, a, b, C0, H, W)
            h0 = jnp.transpose(ph, (0, 3, 4, 1, 5, 2)).reshape(
                N, c0, 2 * H, 2 * W).astype(jnp.float32)
        return (h0, h1, h2)

    def __call__(self, x_nchw):
        return self._forward(x_nchw)


# ----------------------------------------------------------------------------
# Pure-JAX reference in the ORIGINAL op order (upsample -> conv1x1 -> BN;
# conv3x3 -> BN), f32 math on the same bf16-rounded weights/activations, so it
# checks the kernel's indexing / phase-folding / border fixup / layout.
# ----------------------------------------------------------------------------
def _reference(router, x_nchw):
    xr = x_nchw.astype(jnp.bfloat16).astype(jnp.float32)    # match MXU operand rounding
    x = jnp.transpose(xr, (0, 2, 3, 1))                     # NHWC
    dn = ('NHWC', 'HWIO', 'NHWC')
    hp = lax.Precision.HIGHEST
    c1 = router.c1
    ccat = c1 + (router.c2 if router.has2 else 0)
    w3 = router.wbig[:ccat].astype(jnp.float32).reshape(ccat, 3, 3, router.inp)
    w_hwio = jnp.transpose(w3, (1, 2, 3, 0))                # (3,3,Cin,Ccat)
    b = router.bbig[:, 0]

    h0 = h1 = h2 = None
    if router.has0:
        up = _upsample1d_x2(_upsample1d_x2(x, 1), 2)        # upsample BEFORE conv (orig order)
        w0 = router.w0k.astype(jnp.float32)
        h0 = (jnp.einsum('nhwc,oc->nohw', up, w0, precision=hp)
              + router.b0[None, :, None, None])
    y1 = lax.conv_general_dilated(x, w_hwio[..., :c1], (1, 1), ((1, 1), (1, 1)),
                                  dimension_numbers=dn, precision=hp)
    h1 = jnp.transpose(y1, (0, 3, 1, 2)) + b[None, :c1, None, None]
    if router.has2:
        y2 = lax.conv_general_dilated(x, w_hwio[..., c1:ccat], (2, 2), ((1, 1), (1, 1)),
                                      dimension_numbers=dn, precision=hp)
        h2 = jnp.transpose(y2, (0, 3, 1, 2)) + b[None, c1:ccat, None, None]
    return (h0, h1, h2)


if __name__ == "__main__":
    key = jax.random.PRNGKey(0)
    kx, kp = jax.random.split(key)

    N, inp, H, W = 2, 4, 16, 16
    C = 8
    ind = 1                     # 0 < ind < num_strides - 1  -> all three branches active
    x = jax.random.normal(kx, (N, inp, H, W), jnp.float32)    # NCHW, like PyTorch

    router = RouterPallas(ind=ind, inp=inp, C=C, num_strides=4, key=kp)
    outs = jax.block_until_ready(router(x))

    refs = _reference(router, x)
    for name, o, r in zip(("h0", "h1", "h2"), outs, refs):
        if o is None and r is None:
            continue
        assert o.shape == r.shape, (name, o.shape, r.shape)
        err = float(jnp.max(jnp.abs(o - r)))
        assert jnp.allclose(o, r, rtol=2e-2, atol=2e-2), (name, err)

    print("KERNEL_OK")
</pallas_src>

<mosaic_0001>
module attributes {stable_mosaic.version = 11 : i64} {
  func.func @kernel(%arg0: i32, %arg1: memref<1x4x342xf32, #tpu.memory_space<vmem>>, %arg2: memref<40x36xbf16, #tpu.memory_space<vmem>>, %arg3: memref<40x1xf32, #tpu.memory_space<vmem>>, %arg4: memref<16x288xf32, #tpu.memory_space<vmem>>, %arg5: memref<1x8x288xbf16, #tpu.memory_space<vmem>>, %arg6: memref<1x16x288xbf16, #tpu.memory_space<vmem>>, %arg7: memref<1x16x288xbf16, #tpu.memory_space<vmem>>, %arg8: memref<36x288xf32, #tpu.memory_space<vmem>>) attributes {dimension_semantics = [#tpu.dimension_semantics<parallel>], iteration_bounds = array<i64: 2>, scalar_prefetch = 0 : i64, scratch_operands = 1 : i64, tpu.core_type = #tpu.core_type<tc>, window_params = [{transform_indices = @transform_0, window_bounds = array<i64: 1, 4, 342>}, {pipeline_mode = #tpu.pipeline_mode<synchronous>, transform_indices = @transform_1, window_bounds = array<i64: 40, 36>}, {pipeline_mode = #tpu.pipeline_mode<synchronous>, transform_indices = @transform_2, window_bounds = array<i64: 40, 1>}, {pipeline_mode = #tpu.pipeline_mode<synchronous>, transform_indices = @transform_3, window_bounds = array<i64: 16, 288>}, {transform_indices = @transform_4, window_bounds = array<i64: 1, 8, 288>}, {transform_indices = @transform_5, window_bounds = array<i64: 1, 16, 288>}, {transform_indices = @transform_6, window_bounds = array<i64: 1, 16, 288>}]} {
    %c0 = arith.constant 0 : index
    %c0_0 = arith.constant 0 : index
    %c0_1 = arith.constant 0 : index
    %0 = vector.load %arg1[%c0, %c0_0, %c0_1] : memref<1x4x342xf32, #tpu.memory_space<vmem>>, vector<1x4x288xf32>
    %1 = vector.shape_cast %0 : vector<1x4x288xf32> to vector<4x288xf32>
    %c0_2 = arith.constant 0 : index
    %c0_3 = arith.constant 0 : index
    %2 = vector.load %arg8[%c0_2, %c0_3] : memref<36x288xf32, #tpu.memory_space<vmem>>, vector<4x288xf32>
    tpu.vector_store %arg8[%c0_2, %c0_3], %1 {strides = array<i32>} : memref<36x288xf32, #tpu.memory_space<vmem>>, vector<4x288xf32>,
    %c0_4 = arith.constant 0 : index
    %c0_5 = arith.constant 0 : index
    %c1 = arith.constant 1 : index
    %3 = vector.load %arg1[%c0_4, %c0_5, %c1] : memref<1x4x342xf32, #tpu.memory_space<vmem>>, vector<1x4x288xf32>
    %4 = vector.shape_cast %3 : vector<1x4x288xf32> to vector<4x288xf32>
    %c4 = arith.constant 4 : index
    %c0_6 = arith.constant 0 : index
    %5 = vector.load %arg8[%c4, %c0_6] : memref<36x288xf32, #tpu.memory_space<vmem>>, vector<4x288xf32>
    tpu.vector_store %arg8[%c4, %c0_6], %4 {strides = array<i32>} : memref<36x288xf32, #tpu.memory_space<vmem>>, vector<4x288xf32>,
    %c0_7 = arith.constant 0 : index
    %c0_8 = arith.constant 0 : index
    %c2 = arith.constant 2 : index
    %6 = vector.load %arg1[%c0_7, %c0_8, %c2] : memref<1x4x342xf32, #tpu.memory_space<vmem>>, vector<1x4x288xf32>
    %7 = vector.shape_cast %6 : vector<1x4x288xf32> to vector<4x288xf32>
    %c8 = arith.constant 8 : index
    %c0_9 = arith.constant 0 : index
    %8 = vector.load %arg8[%c8, %c0_9] : memref<36x288xf32, #tpu.memory_space<vmem>>, vector<4x288xf32>
    tpu.vector_store %arg8[%c8, %c0_9], %7 {strides = array<i32>} : memref<36x288xf32, #tpu.memory_space<vmem>>, vector<4x288xf32>,
    %c0_10 = arith.constant 0 : index
    %c0_11 = arith.constant 0 : index
    %c18 = arith.constant 18 : index
    %9 = vector.load %arg1[%c0_10, %c0_11, %c18] : memref<1x4x342xf32, #tpu.memory_space<vmem>>, vector<1x4x288xf32>
    %10 = vector.shape_cast %9 : vector<1x4x288xf32> to vector<4x288xf32>
    %c12 = arith.constant 12 : index
    %c0_12 = arith.constant 0 : index
    %11 = vector.load %arg8[%c12, %c0_12] : memref<36x288xf32, #tpu.memory_space<vmem>>, vector<4x288xf32>
    tpu.vector_store %arg8[%c12, %c0_12], %10 {strides = array<i32>} : memref<36x288xf32, #tpu.memory_space<vmem>>, vector<4x288xf32>,
    %c0_13 = arith.constant 0 : index
    %c0_14 = arith.constant 0 : index
    %c19 = arith.constant 19 : index
    %12 = vector.load %arg1[%c0_13, %c0_14, %c19] : memref<1x4x342xf32, #tpu.memory_space<vmem>>, vector<1x4x288xf32>
    %13 = vector.shape_cast %12 : vector<1x4x288xf32> to vector<4x288xf32>
    %c16 = arith.constant 16 : index
    %c0_15 = arith.constant 0 : index
    %14 = vector.load %arg8[%c16, %c0_15] : memref<36x288xf32, #tpu.memory_space<vmem>>, vector<4x288xf32>
    tpu.vector_store %arg8[%c16, %c0_15], %13 {strides = array<i32>} : memref<36x288xf32, #tpu.memory_space<vmem>>, vector<4x288xf32>,
    %c0_16 = arith.constant 0 : index
    %c0_17 = arith.constant 0 : index
    %c20 = arith.constant 20 : index
    %15 = vector.load %arg1[%c0_16, %c0_17, %c20] : memref<1x4x342xf32, #tpu.memory_space<vmem>>, vector<1x4x288xf32>
    %16 = vector.shape_cast %15 : vector<1x4x288xf32> to vector<4x288xf32>
    %c20_18 = arith.constant 20 : index
    %c0_19 = arith.constant 0 : index
    %17 = vector.load %arg8[%c20_18, %c0_19] : memref<36x288xf32, #tpu.memory_space<vmem>>, vector<4x288xf32>
    tpu.vector_store %arg8[%c20_18, %c0_19], %16 {strides = array<i32>} : memref<36x288xf32, #tpu.memory_space<vmem>>, vector<4x288xf32>,
    %c0_20 = arith.constant 0 : index
    %c0_21 = arith.constant 0 : index
    %c36 = arith.constant 36 : index
    %18 = vector.load %arg1[%c0_20, %c0_21, %c36] : memref<1x4x342xf32, #tpu.memory_space<vmem>>, vector<1x4x288xf32>
    %19 = vector.shape_cast %18 : vector<1x4x288xf32> to vector<4x288xf32>
    %c24 = arith.constant 24 : index
    %c0_22 = arith.constant 0 : index
    %20 = vector.load %arg8[%c24, %c0_22] : memref<36x288xf32, #tpu.memory_space<vmem>>, vector<4x288xf32>
    tpu.vector_store %arg8[%c24, %c0_22], %19 {strides = array<i32>} : memref<36x288xf32, #tpu.memory_space<vmem>>, vector<4x288xf32>,
    %c0_23 = arith.constant 0 : index
    %c0_24 = arith.constant 0 : index
    %c37 = arith.constant 37 : index
    %21 = vector.load %arg1[%c0_23, %c0_24, %c37] : memref<1x4x342xf32, #tpu.memory_space<vmem>>, vector<1x4x288xf32>
    %22 = vector.shape_cast %21 : vector<1x4x288xf32> to vector<4x288xf32>
    %c28 = arith.constant 28 : index
    %c0_25 = arith.constant 0 : index
    %23 = vector.load %arg8[%c28, %c0_25] : memref<36x288xf32, #tpu.memory_space<vmem>>, vector<4x288xf32>
    tpu.vector_store %arg8[%c28, %c0_25], %22 {strides = array<i32>} : memref<36x288xf32, #tpu.memory_space<vmem>>, vector<4x288xf32>,
    %c0_26 = arith.constant 0 : index
    %c0_27 = arith.constant 0 : index
    %c38 = arith.constant 38 : index
    %24 = vector.load %arg1[%c0_26, %c0_27, %c38] : memref<1x4x342xf32, #tpu.memory_space<vmem>>, vector<1x4x288xf32>
    %25 = vector.shape_cast %24 : vector<1x4x288xf32> to vector<4x288xf32>
    %c32 = arith.constant 32 : index
    %c0_28 = arith.constant 0 : index
    %26 = vector.load %arg8[%c32, %c0_28] : memref<36x288xf32, #tpu.memory_space<vmem>>, vector<4x288xf32>
    tpu.vector_store %arg8[%c32, %c0_28], %25 {strides = array<i32>} : memref<36x288xf32, #tpu.memory_space<vmem>>, vector<4x288xf32>,
    %c0_29 = arith.constant 0 : index
    %c0_30 = arith.constant 0 : index
    %27 = vector.load %arg2[%c0_29, %c0_30] : memref<40x36xbf16, #tpu.memory_space<vmem>>, vector<40x36xbf16>
    %c0_31 = arith.constant 0 : index
    %c0_32 = arith.constant 0 : index
    %28 = vector.load %arg8[%c0_31, %c0_32] : memref<36x288xf32, #tpu.memory_space<vmem>>, vector<36x288xf32>
    %29 = arith.truncf %28 : vector<36x288xf32> to vector<36x288xbf16>
    %cst = arith.constant dense<0.000000e+00> : vector<40x288xf32>
    %30 = tpu.matmul %27, %29, %cst {dimension_numbers = #tpu.dot_dimension_numbers<[1], [0], [0], [1], [0, 0, 1, 1], [], []>} : vector<40x36xbf16>, vector<36x288xbf16>, vector<40x288xf32> -> vector<40x288xf32>
    %c0_33 = arith.constant 0 : index
    %c0_34 = arith.constant 0 : index
    %31 = vector.load %arg3[%c0_33, %c0_34] : memref<40x1xf32, #tpu.memory_space<vmem>>, vector<40x1xf32>
    %32 = vector.extract_strided_slice %30 {offsets = [0, 0], sizes = [24, 288], strides = [1, 1]} : vector<40x288xf32> to vector<24x288xf32>
    %33 = vector.extract_strided_slice %31 {offsets = [0, 0], sizes = [24, 1], strides = [1, 1]} : vector<40x1xf32> to vector<24x1xf32>
    %34 = vector.broadcast %33 : vector<24x1xf32> to vector<24x288xf32>
    %35 = arith.addf %32, %34 : vector<24x288xf32>
    %36 = vector.extract_strided_slice %35 {offsets = [0, 0], sizes = [8, 288], strides = [1, 1]} : vector<24x288xf32> to vector<8x288xf32>
    %37 = arith.truncf %36 : vector<8x288xf32> to vector<8x288xbf16>
    %c0_35 = arith.constant 0 : index
    %c0_36 = arith.constant 0 : index
    %c0_37 = arith.constant 0 : index
    %38 = vector.load %arg5[%c0_35, %c0_36, %c0_37] : memref<1x8x288xbf16, #tpu.memory_space<vmem>>, vector<1x8x288xbf16>
    %39 = vector.shape_cast %38 : vector<1x8x288xbf16> to vector<8x288xbf16>
    %40 = vector.shape_cast %37 : vector<8x288xbf16> to vector<1x8x288xbf16>
    tpu.vector_store %arg5[%c0_35, %c0_36, %c0_37], %40 {strides = array<i32>} : memref<1x8x288xbf16, #tpu.memory_space<vmem>>, vector<1x8x288xbf16>,
    %41 = vector.extract_strided_slice %35 {offsets = [8, 0], sizes = [16, 288], strides = [1, 1]} : vector<24x288xf32> to vector<16x288xf32>
    %42 = arith.truncf %41 : vector<16x288xf32> to vector<16x288xbf16>
    %c0_38 = arith.constant 0 : index
    %c0_39 = arith.constant 0 : index
    %c0_40 = arith.constant 0 : index
    %43 = vector.load %arg6[%c0_38, %c0_39, %c0_40] : memref<1x16x288xbf16, #tpu.memory_space<vmem>>, vector<1x16x288xbf16>
    %44 = vector.shape_cast %43 : vector<1x16x288xbf16> to vector<16x288xbf16>
    %45 = vector.shape_cast %42 : vector<16x288xbf16> to vector<1x16x288xbf16>
    tpu.vector_store %arg6[%c0_38, %c0_39, %c0_40], %45 {strides = array<i32>} : memref<1x16x288xbf16, #tpu.memory_space<vmem>>, vector<1x16x288xbf16>,
    %46 = vector.extract_strided_slice %30 {offsets = [24, 0], sizes = [16, 288], strides = [1, 1]} : vector<40x288xf32> to vector<16x288xf32>
    %c0_41 = arith.constant 0 : index
    %c0_42 = arith.constant 0 : index
    %47 = vector.load %arg4[%c0_41, %c0_42] : memref<16x288xf32, #tpu.memory_space<vmem>>, vector<16x288xf32>
    %48 = arith.mulf %46, %47 : vector<16x288xf32>
    %49 = vector.extract_strided_slice %31 {offsets = [24, 0], sizes = [16, 1], strides = [1, 1]} : vector<40x1xf32> to vector<16x1xf32>
    %50 = vector.broadcast %49 : vector<16x1xf32> to vector<16x288xf32>
    %51 = arith.addf %48, %50 : vector<16x288xf32>
    %52 = arith.truncf %51 : vector<16x288xf32> to vector<16x288xbf16>
    %c0_43 = arith.constant 0 : index
    %c0_44 = arith.constant 0 : index
    %c0_45 = arith.constant 0 : index
    %53 = vector.load %arg7[%c0_43, %c0_44, %c0_45] : memref<1x16x288xbf16, #tpu.memory_space<vmem>>, vector<1x16x288xbf16>
    %54 = vector.shape_cast %53 : vector<1x16x288xbf16> to vector<16x288xbf16>
    %55 = vector.shape_cast %52 : vector<16x288xbf16> to vector<1x16x288xbf16>
    tpu.vector_store %arg7[%c0_43, %c0_44, %c0_45], %55 {strides = array<i32>} : memref<1x16x288xbf16, #tpu.memory_space<vmem>>, vector<1x16x288xbf16>,
    return
  }
  func.func @transform_0(%arg0: i32) -> (i32, i32, i32) {
    %c0_i32 = arith.constant 0 : i32
    %c0_i32_0 = arith.constant 0 : i32
    %c0_i32_1 = arith.constant 0 : i32
    return %arg0, %c0_i32, %c0_i32_0 : i32, i32, i32
  }
  func.func @transform_1(%arg0: i32) -> (i32, i32) {
    %c0_i32 = arith.constant 0 : i32
    %c0_i32_0 = arith.constant 0 : i32
    %c0_i32_1 = arith.constant 0 : i32
    return %c0_i32, %c0_i32_0 : i32, i32
  }
  func.func @transform_2(%arg0: i32) -> (i32, i32) {
    %c0_i32 = arith.constant 0 : i32
    %c0_i32_0 = arith.constant 0 : i32
    %c0_i32_1 = arith.constant 0 : i32
    return %c0_i32, %c0_i32_0 : i32, i32
  }
  func.func @transform_3(%arg0: i32) -> (i32, i32) {
    %c0_i32 = arith.constant 0 : i32
    %c0_i32_0 = arith.constant 0 : i32
    %c0_i32_1 = arith.constant 0 : i32
    return %c0_i32, %c0_i32_0 : i32, i32
  }
  func.func @transform_4(%arg0: i32) -> (i32, i32, i32) {
    %c0_i32 = arith.constant 0 : i32
    %c0_i32_0 = arith.constant 0 : i32
    %c0_i32_1 = arith.constant 0 : i32
    return %arg0, %c0_i32, %c0_i32_0 : i32, i32, i32
  }
  func.func @transform_5(%arg0: i32) -> (i32, i32, i32) {
    %c0_i32 = arith.constant 0 : i32
    %c0_i32_0 = arith.constant 0 : i32
    %c0_i32_1 = arith.constant 0 : i32
    return %arg0, %c0_i32, %c0_i32_0 : i32, i32, i32
  }
  func.func @transform_6(%arg0: i32) -> (i32, i32, i32) {
    %c0_i32 = arith.constant 0 : i32
    %c0_i32_0 = arith.constant 0 : i32
    %c0_i32_1 = arith.constant 0 : i32
    return %arg0, %c0_i32, %c0_i32_0 : i32, i32, i32
  }
}

</mosaic_0001>

<llo_original>
// kernel: _forward_impl.1
$region0: #{_forward_impl.1}
  #allocation0 [shape = 'u32[]', space=smem, size = 0x4, offset = 0x4, fixed_abs, tag = 'smem constant byte address 0x4 - core index']
  #allocation1 [shape = 'u32[72,128]{1,0:T(1,128)}', space=vmem, size = 0x9000, scoped, tag = 'internal scratch']
  #allocation2 [shape = 'f32[36,288]{1,0:T(8,128)}', space=vmem, size = 0xf000, scoped, tag = 'scratch operand']
  %s0 = inlined_call_operand.vmem [shape: f32[2,4,342], index: 0, kind: input, shape index: {}]
  %s1 = inlined_call_operand.vmem [shape: bf16[40,36], index: 1, kind: input, shape index: {}]
  %s2 = inlined_call_operand.vmem [shape: f32[40,1], index: 2, kind: input, shape index: {}]
  %s3 = inlined_call_operand.vmem [shape: f32[16,288], index: 3, kind: input, shape index: {}]
  %s4 = inlined_call_operand.vmem [shape: bf16[2,8,288], index: 4, kind: output, shape index: {0}]
  %s5 = inlined_call_operand.vmem [shape: bf16[2,16,288], index: 5, kind: output, shape index: {1}]
  %s6 = inlined_call_operand.vmem [shape: bf16[2,16,288], index: 6, kind: output, shape index: {2}]
  %7 = xla_tuple %s4, %s5, %s6
  %s8 = sld [smem:[#allocation0]]
  $region65: #{_forward_impl.1} parent=0
    _
  %s10 = ssub.s32 1, %s8
  %s11 = scalar_select 0, %s10, %s8
  loop: start=0, step=1, limit=4
  $region2: #{_forward_impl.1} parent=0 // loop_pre_header
    _
  $region3: #{_forward_impl.1} parent=0 // loop_header
    %s13 = sphi 0, %s17
    %p14 = scmp.ge.s32.totalorder %s13, 4
    %s23 = sphi 0, %s25
    %s26 = sphi 0, %s23
    %s27 = sphi 0, %s26
    %s43 = sphi 0, %s27
    %s47 = sphi 0, %s47
    %s49 = sphi 0, %s47
    %s50 = sphi 0, %s49
    %s64 = sphi 0, %s50
    %s68 = sphi 0, %s68
    %s70 = sphi 0, %s68
    %s71 = sphi 0, %s70
    %s85 = sphi 0, %s71
    %s89 = sphi 0, %s89
    %s91 = sphi 0, %s89
    %s92 = sphi 0, %s91
    %s106 = sphi 0, %s92
    %s112 = sphi 0, %s114
    %s115 = sphi 0, %s112
    %s116 = sphi 0, %s115
    %s132 = sphi 0, %s116
    %s138 = sphi 0, %s140
    %s141 = sphi 0, %s138
    %s142 = sphi 0, %s141
    %s158 = sphi 0, %s142
    %s164 = sphi 0, %s166
    %s167 = sphi 0, %s164
    %s168 = sphi 0, %s167
    %s184 = sphi 0, %s168
  $region4: #{_forward_impl.1} parent=0 // loop_header_branch
    %16 = sbr.rel (%p14) target = $region8
  $region5: #{_forward_impl.1} parent=0 // loop_body
    %s18 = ssub.s32 %s13, 1
    %s19 = ssub.s32 %s13, 2
    %s20 = sadd.s32 %s13, 1
    %s21 = ssub.s32 %s13, %s20
    %p22 = scmp.eq.s32.totalorder %s21, 0
    %s24 = sadd.s32 %s23, 1
    %s25 = scalar_select %p22, %s23, %s24
    %p28 = pneg %p22
    %p29 = scmp.eq.s32.totalorder %s13, 1
    %p30 = por %p28, %p29
    %p31 = scmp.ne.s32.totalorder %s23, %s26
    %p32 = scmp.eq.s32.totalorder %s13, 0
    %p33 = por %p31, %p32
    %p34 = scmp.ne.s32.totalorder %s23, %s26
    %p35 = scmp.eq.s32.totalorder %s18, 1
    %p36 = por %p34, %p35
    %p37 = scmp.ne.s32.totalorder %s26, %s27
    %p38 = scmp.eq.s32.totalorder %s18, 0
    %p39 = por %p37, %p38
    %p40 = scmp.ne.s32.totalorder %s26, %s27
    %p41 = scmp.eq.s32.totalorder %s19, 1
    %p42 = por %p40, %p41
    %p44 = scmp.ne.s32.totalorder %s27, %s43
    %p45 = scmp.eq.s32.totalorder %s19, 0
    %p46 = por %p44, %p45
    %s48 = sadd.s32 %s47, 1
    %p51 = scmp.eq.s32.totalorder %s13, 1
    %p52 = scmp.ne.s32.totalorder %s47, %s49
    %p53 = scmp.eq.s32.totalorder %s13, 0
    %p54 = por %p52, %p53
    %p55 = scmp.ne.s32.totalorder %s47, %s49
    %p56 = scmp.eq.s32.totalorder %s18, 1
    %p57 = por %p55, %p56
    %p58 = scmp.ne.s32.totalorder %s49, %s50
    %p59 = scmp.eq.s32.totalorder %s18, 0
    %p60 = por %p58, %p59
    %p61 = scmp.ne.s32.totalorder %s49, %s50
    %p62 = scmp.eq.s32.totalorder %s19, 1
    %p63 = por %p61, %p62
    %p65 = scmp.ne.s32.totalorder %s50, %s64
    %p66 = scmp.eq.s32.totalorder %s19, 0
    %p67 = por %p65, %p66
    %s69 = sadd.s32 %s68, 1
    %p72 = scmp.eq.s32.totalorder %s13, 1
    %p73 = scmp.ne.s32.totalorder %s68, %s70
    %p74 = scmp.eq.s32.totalorder %s13, 0
    %p75 = por %p73, %p74
    %p76 = scmp.ne.s32.totalorder %s68, %s70
    %p77 = scmp.eq.s32.totalorder %s18, 1
    %p78 = por %p76, %p77
    %p79 = scmp.ne.s32.totalorder %s70, %s71
    %p80 = scmp.eq.s32.totalorder %s18, 0
    %p81 = por %p79, %p80
    %p82 = scmp.ne.s32.totalorder %s70, %s71
    %p83 = scmp.eq.s32.totalorder %s19, 1
    %p84 = por %p82, %p83
    %p86 = scmp.ne.s32.totalorder %s71, %s85
    %p87 = scmp.eq.s32.totalorder %s19, 0
    %p88 = por %p86, %p87
    %s90 = sadd.s32 %s89, 1
    %p93 = scmp.eq.s32.totalorder %s13, 1
    %p94 = scmp.ne.s32.totalorder %s89, %s91
    %p95 = scmp.eq.s32.totalorder %s13, 0
    %p96 = por %p94, %p95
    %p97 = scmp.ne.s32.totalorder %s89, %s91
    %p98 = scmp.eq.s32.totalorder %s18, 1
    %p99 = por %p97, %p98
    %p100 = scmp.ne.s32.totalorder %s91, %s92
    %p101 = scmp.eq.s32.totalorder %s18, 0
    %p102 = por %p100, %p101
    %p103 = scmp.ne.s32.totalorder %s91, %s92
    %p104 = scmp.eq.s32.totalorder %s19, 1
    %p105 = por %p103, %p104
    %p107 = scmp.ne.s32.totalorder %s92, %s106
    %p108 = scmp.eq.s32.totalorder %s19, 0
    %p109 = por %p107, %p108
    %s110 = ssub.s32 %s13, %s20
    %p111 = scmp.eq.s32.totalorder %s110, 0
    %s113 = sadd.s32 %s112, 1
    %s114 = scalar_select %p111, %s112, %s113
    %p117 = pneg %p111
    %p118 = scmp.eq.s32.totalorder %s13, 1
    %p119 = por %p117, %p118
    %p120 = scmp.ne.s32.totalorder %s112, %s115
    %p121 = scmp.eq.s32.totalorder %s13, 0
    %p122 = por %p120, %p121
    %p123 = scmp.ne.s32.totalorder %s112, %s115
    %p124 = scmp.eq.s32.totalorder %s18, 1
    %p125 = por %p123, %p124
    %p126 = scmp.ne.s32.totalorder %s115, %s116
    %p127 = scmp.eq.s32.totalorder %s18, 0
    %p128 = por %p126, %p127
    %p129 = scmp.ne.s32.totalorder %s115, %s116
    %p130 = scmp.eq.s32.totalorder %s19, 1
    %p131 = por %p129, %p130
    %p133 = scmp.ne.s32.totalorder %s116, %s132
    %p134 = scmp.eq.s32.totalorder %s19, 0
    %p135 = por %p133, %p134
    %s136 = ssub.s32 %s13, %s20
    %p137 = scmp.eq.s32.totalorder %s136, 0
    %s139 = sadd.s32 %s138, 1
    %s140 = scalar_select %p137, %s138, %s139
    %p143 = pneg %p137
    %p144 = scmp.eq.s32.totalorder %s13, 1
    %p145 = por %p143, %p144
    %p146 = scmp.ne.s32.totalorder %s138, %s141
    %p147 = scmp.eq.s32.totalorder %s13, 0
    %p148 = por %p146, %p147
    %p149 = scmp.ne.s32.totalorder %s138, %s141
    %p150 = scmp.eq.s32.totalorder %s18, 1
    %p151 = por %p149, %p150
    %p152 = scmp.ne.s32.totalorder %s141, %s142
    %p153 = scmp.eq.s32.totalorder %s18, 0
    %p154 = por %p152, %p153
    %p155 = scmp.ne.s32.totalorder %s141, %s142
    %p156 = scmp.eq.s32.totalorder %s19, 1
    %p157 = por %p155, %p156
    %p159 = scmp.ne.s32.totalorder %s142, %s158
    %p160 = scmp.eq.s32.totalorder %s19, 0
    %p161 = por %p159, %p160
    %s162 = ssub.s32 %s13, %s20
    %p163 = scmp.eq.s32.totalorder %s162, 0
    %s165 = sadd.s32 %s164, 1
    %s166 = scalar_select %p163, %s164, %s165
    %p169 = pneg %p163
    %p170 = scmp.eq.s32.totalorder %s13, 1
    %p171 = por %p169, %p170
    %p172 = scmp.ne.s32.totalorder %s164, %s167
    %p173 = scmp.eq.s32.totalorder %s13, 0
    %p174 = por %p172, %p173
    %p175 = scmp.ne.s32.totalorder %s164, %s167
    %p176 = scmp.eq.s32.totalorder %s18, 1
    %p177 = por %p175, %p176
    %p178 = scmp.ne.s32.totalorder %s167, %s168
    %p179 = scmp.eq.s32.totalorder %s18, 0
    %p180 = por %p178, %p179
    %p181 = scmp.ne.s32.totalorder %s167, %s168
    %p182 = scmp.eq.s32.totalorder %s19, 1
    %p183 = por %p181, %p182
    %p185 = scmp.ne.s32.totalorder %s168, %s184
    %p186 = scmp.eq.s32.totalorder %s19, 0
    %p187 = por %p185, %p186
    %p188 = scmp.le.s32.totalorder 1, %s13
    %p189 = scmp.lt.s32.totalorder %s13, 3
    %p190 = pnand %p188, %p189
    %p191 = pneg %p190
    // Predicated region
    $region9: #{_forward_impl.1} parent=5 // pred_check
      _
    $region10: #{_forward_impl.1} parent=5 // pred_check_branch
      %193 = sbr.rel (%p190) target = $region12
    $region11: #{_forward_impl.1} parent=5 // pred_region
      %s194 = ssub.s32 %s13, 1
      // Predicated region
      $region13: #{_forward_impl.1} parent=11 // pred_check
        %p195 = pneg %p60
      $region14: #{_forward_impl.1} parent=11 // pred_check_branch
        %197 = sbr.rel (%p195) target = $region16
      $region15: #{_forward_impl.1} parent=11 // pred_region
        _
      $region16: #{_forward_impl.1} parent=11 // pred_fallthru
        _
      // Predicated region
      $region17: #{_forward_impl.1} parent=11 // pred_check
        %p198 = pneg %p81
      $region18: #{_forward_impl.1} parent=11 // pred_check_branch
        %200 = sbr.rel (%p198) target = $region20
      $region19: #{_forward_impl.1} parent=11 // pred_region
        _
      $region20: #{_forward_impl.1} parent=11 // pred_fallthru
        _
      // Predicated region
      $region21: #{_forward_impl.1} parent=11 // pred_check
        %p201 = pneg %p102
      $region22: #{_forward_impl.1} parent=11 // pred_check_branch
        %203 = sbr.rel (%p201) target = $region24
      $region23: #{_forward_impl.1} parent=11 // pred_region
        _
      $region24: #{_forward_impl.1} parent=11 // pred_fallthru
        _
    $region12: #{_forward_impl.1} parent=5 // pred_fallthru
      _
    %p204 = scmp.lt.s32.totalorder %s13, 2
    // Predicated region
    $region25: #{_forward_impl.1} parent=5 // pred_check
      %p205 = pneg %p204
    $region26: #{_forward_impl.1} parent=5 // pred_check_branch
      %207 = sbr.rel (%p205) target = $region28
    $region27: #{_forward_impl.1} parent=5 // pred_region
      // Predicated region
      $region29: #{_forward_impl.1} parent=27 // pred_check
        %p208 = pneg %p33
      $region30: #{_forward_impl.1} parent=27 // pred_check_branch
        %210 = sbr.rel (%p208) target = $region32
      $region31: #{_forward_impl.1} parent=27 // pred_region
        %p211 = scmp.lt.s32.totalorder %s13, 1
        %s212 = scalar_select %p211, %s13, 1
        %s213 = smul.addr %s212, 3
        %s214 = smul.addr %s213, 4
        %s215 = scalar_lea.vmem %s0, %s214
      $region32: #{_forward_impl.1} parent=27 // pred_fallthru
        _
    $region28: #{_forward_impl.1} parent=5 // pred_fallthru
      _
    %p216 = scmp.le.s32.totalorder 1, %s13
    %p217 = scmp.lt.s32.totalorder %s13, 3
    %p218 = pnand %p216, %p217
    %p219 = pneg %p218
    // Predicated region
    $region33: #{_forward_impl.1} parent=5 // pred_check
      _
    $region34: #{_forward_impl.1} parent=5 // pred_check_branch
      %221 = sbr.rel (%p218) target = $region36
    $region35: #{_forward_impl.1} parent=5 // pred_region
      %s222 = ssub.s32 %s13, 1
      %p223 = scmp.lt.s32.totalorder %s18, 1
      %s224 = scalar_select %p223, %s18, 1
      %s225 = smul.addr %s224, 3
      %s226 = smul.addr %s225, 4
      %s227 = scalar_lea.vmem %s0, %s226
      %p228 = pneg %p39
      %p229 = pneg %p36
      %p230 = pneg %p60
      %p231 = pneg %p57
      %p232 = pneg %p81
      %p233 = pneg %p78
      %p234 = pneg %p102
      %p235 = pneg %p99
      %p236 = pneg %p128
      %p237 = pneg %p125
      %p238 = scmp.lt.s32.totalorder %s18, 1
      %s239 = scalar_select %p238, %s18, 1
      %s240 = smul.addr %s239, 3
      %s241 = smul.addr %s240, 4
      %s242 = scalar_lea.vmem %s4, %s241
      %p243 = pneg %p154
      %p244 = pneg %p151
      %p245 = scmp.lt.s32.totalorder %s18, 1
      %s246 = scalar_select %p245, %s18, 1
      %s247 = smul.addr %s246, 6
      %s248 = smul.addr %s247, 4
      %s249 = scalar_lea.vmem %s5, %s248
      %p250 = pneg %p180
      %p251 = pneg %p177
      %p252 = scmp.lt.s32.totalorder %s18, 1
      %s253 = scalar_select %p252, %s18, 1
      %s254 = smul.addr %s253, 6
      %s255 = smul.addr %s254, 4
      %s256 = scalar_lea.vmem %s6, %s255
      %p257 = scmp.lt.s32.totalorder %s18, 1
      %s258 = scalar_select %p257, %s18, 1
      %s259 = smul.addr %s258, 3
      %s260 = smul.addr %s259, 4
      %s261 = scalar_lea.vmem %s0, %s260
      %p262 = scmp.lt.s32.totalorder %s18, 1
      %s263 = scalar_select %p262, %s18, 1
      %s264 = smul.addr %s263, 3
      %s265 = smul.addr %s264, 4
      %s266 = scalar_lea.vmem %s4, %s265
      %p267 = scmp.lt.s32.totalorder %s18, 1
      %s268 = scalar_select %p267, %s18, 1
      %s269 = smul.addr %s268, 6
      %s270 = smul.addr %s269, 4
      %s271 = scalar_lea.vmem %s5, %s270
      %p272 = scmp.lt.s32.totalorder %s18, 1
      %s273 = scalar_select %p272, %s18, 1
      %s274 = smul.addr %s273, 6
      %s275 = smul.addr %s274, 4
      %s276 = scalar_lea.vmem %s6, %s275
      %v278 = vld [vmem:[%s261] sm:$0xff]
      %v279 = vld [vmem:[%s261 + $0x8] sm:$0xf]
      %282 = vst [vmem:[#allocation1] ss:$2 sm:$0xff] %v278
      %s283 = scalar_lea.vmem [#allocation1], 16
      %284 = vst [vmem:[%s283] ss:$2 sm:$0xff] %v279
      %v285 = vld.sshfl [vmem:[#allocation1] sm:$0xff pattern:$0x75316420]
      %v286 = vld.sshfl [vmem:[#allocation1 + $0x8] sm:$0xff pattern:$0x75316420]
      %v287 = vld.sshfl [vmem:[#allocation1 + $0x10] sm:$0xff pattern:$0x75316420]
      %291 = vst [vmem:[#allocation2] sm:$0xf] %v285
      %292 = vst [vmem:[#allocation2 + $0x8] sm:$0xf] %v286
      %vm293 = vcmask 257024
      %294 = vst.msk [vmem:[#allocation2 + $0x10] sm:$0xf] %vm293, %v287
      %v295 = vld [vmem:[%s261] sm:$0xff]
      %v296 = vld [vmem:[%s261 + $0x8] sm:$0xf]
      %s299 = scalar_lea.vmem [#allocation1], 1
      %300 = vst [vmem:[%s299] ss:$2 sm:$0xff] %v295
      %s301 = scalar_lea.vmem [#allocation1], 17
      %302 = vst [vmem:[%s301] ss:$2 sm:$0xff] %v296
      %v303 = vld.sshfl [vmem:[#allocation1] sm:$0xff pattern:$0x75316420]
      %v304 = vld.sshfl [vmem:[#allocation1 + $0x8] sm:$0xff pattern:$0x75316420]
      %v305 = vld.sshfl [vmem:[#allocation1 + $0x10] sm:$0xff pattern:$0x75316420]
      %306 = vrot.lane.b32.xlu0 %v303, 127
      %v307 = vpop.permute.xlu0 %306
      %308 = vrot.lane.b32.xlu0 %v304, 127
      %v309 = vpop.permute.xlu0 %308
      %310 = vrot.lane.b32.xlu0 %v305, 127
      %v311 = vpop.permute.xlu0 %310
      %vm312 = vcmask 1039360
      %v313 = vsel %vm312, %v307, %v309
      %v314 = vsel %vm312, %v309, %v311
      %318 = vst [vmem:[#allocation2] sm:$0xf0] %v313
      %319 = vst [vmem:[#allocation2 + $0x8] sm:$0xf0] %v314
      %vm320 = vcmask 261124
      %321 = vst.msk [vmem:[#allocation2 + $0x10] sm:$0xf0] %vm320, %v311
      %v322 = vld [vmem:[%s261] sm:$0xff]
      %v323 = vld [vmem:[%s261 + $0x8] sm:$0xf]
      %326 = vst [vmem:[#allocation1] ss:$2 sm:$0xff] %v322
      %s327 = scalar_lea.vmem [#allocation1], 16
      %328 = vst [vmem:[%s327] ss:$2 sm:$0xff] %v323
      %v329 = vld.sshfl [vmem:[#allocation1] sm:$0xff pattern:$0x75316420]
      %v330 = vld.sshfl [vmem:[#allocation1 + $0x8] sm:$0xff pattern:$0x75316420]
      %v331 = vld.sshfl [vmem:[#allocation1 + $0x10] sm:$0xff pattern:$0x75316420]
      %332 = vrot.lane.b32.xlu0 %v329, 126
      %v333 = vpop.permute.xlu0 %332
      %334 = vrot.lane.b32.xlu0 %v330, 126
      %v335 = vpop.permute.xlu0 %334
      %336 = vrot.lane.b32.xlu0 %v331, 126
      %v337 = vpop.permute.xlu0 %336
      %vm338 = vcmask 1031168
      %v339 = vsel %vm338, %v333, %v335
      %v340 = vsel %vm338, %v335, %v337
      %344 = vst [vmem:[#allocation2 + $0x18] sm:$0xf] %v339
      %345 = vst [vmem:[#allocation2 + $0x20] sm:$0xf] %v340
      %346 = vst.msk [vmem:[#allocation2 + $0x28] sm:$0xf] %vm293, %v337
      %v347 = vld [vmem:[%s261] sm:$0xff]
      %v348 = vld [vmem:[%s261 + $0x8] sm:$0xf]
      %s351 = scalar_lea.vmem [#allocation1], 1
      %352 = vst [vmem:[%s351] ss:$2 sm:$0xff] %v347
      %s353 = scalar_lea.vmem [#allocation1], 17
      %354 = vst [vmem:[%s353] ss:$2 sm:$0xff] %v348
      %v355 = vld.sshfl [vmem:[#allocation1] sm:$0xff pattern:$0x75316420]
      %v356 = vld.sshfl [vmem:[#allocation1 + $0x8] sm:$0xff pattern:$0x75316420]
      %v357 = vld.sshfl [vmem:[#allocation1 + $0x10] sm:$0xff pattern:$0x75316420]
      %358 = vrot.lane.b32.xlu0 %v355, 110
      %v359 = vpop.permute.xlu0 %358
      %360 = vrot.lane.b32.xlu0 %v356, 110
      %v361 = vpop.permute.xlu0 %360
      %362 = vrot.lane.b32.xlu0 %v357, 110
      %v363 = vpop.permute.xlu0 %362
      %vm364 = vcmask 900096
      %v365 = vsel %vm364, %v359, %v361
      %v366 = vsel %vm364, %v361, %v363
      %370 = vst [vmem:[#allocation2 + $0x18] sm:$0xf0] %v365
      %371 = vst [vmem:[#allocation2 + $0x20] sm:$0xf0] %v366
      %372 = vst.msk [vmem:[#allocation2 + $0x28] sm:$0xf0] %vm320, %v363
      %v373 = vld [vmem:[%s261] sm:$0xff]
      %v374 = vld [vmem:[%s261 + $0x8] sm:$0xf]
      %377 = vst [vmem:[#allocation1] ss:$2 sm:$0xff] %v373
      %s378 = scalar_lea.vmem [#allocation1], 16
      %379 = vst [vmem:[%s378] ss:$2 sm:$0xff] %v374
      %v380 = vld.sshfl [vmem:[#allocation1] sm:$0xff pattern:$0x75316420]
      %v381 = vld.sshfl [vmem:[#allocation1 + $0x8] sm:$0xff pattern:$0x75316420]
      %v382 = vld.sshfl [vmem:[#allocation1 + $0x10] sm:$0xff pattern:$0x75316420]
      %383 = vrot.lane.b32.xlu0 %v380, 109
      %v384 = vpop.permute.xlu0 %383
      %385 = vrot.lane.b32.xlu0 %v381, 109
      %v386 = vpop.permute.xlu0 %385
      %387 = vrot.lane.b32.xlu0 %v382, 109
      %v388 = vpop.permute.xlu0 %387
      %vm389 = vcmask 891904
      %v390 = vsel %vm389, %v384, %v386
      %v391 = vsel %vm389, %v386, %v388
      %395 = vst [vmem:[#allocation2 + $0x30] sm:$0xf] %v390
      %396 = vst [vmem:[#allocation2 + $0x38] sm:$0xf] %v391
      %397 = vst.msk [vmem:[#allocation2 + $0x40] sm:$0xf] %vm293, %v388
      %v398 = vld [vmem:[%s261] sm:$0xff]
      %v399 = vld [vmem:[%s261 + $0x8] sm:$0xf]
      %s402 = scalar_lea.vmem [#allocation1], 1
      %403 = vst [vmem:[%s402] ss:$2 sm:$0xff] %v398
      %s404 = scalar_lea.vmem [#allocation1], 17
      %405 = vst [vmem:[%s404] ss:$2 sm:$0xff] %v399
      %v406 = vld.sshfl [vmem:[#allocation1] sm:$0xff pattern:$0x75316420]
      %v407 = vld.sshfl [vmem:[#allocation1 + $0x8] sm:$0xff pattern:$0x75316420]
      %v408 = vld.sshfl [vmem:[#allocation1 + $0x10] sm:$0xff pattern:$0x75316420]
      %409 = vrot.lane.b32.xlu0 %v406, 108
      %v410 = vpop.permute.xlu0 %409
      %411 = vrot.lane.b32.xlu0 %v407, 108
      %v412 = vpop.permute.xlu0 %411
      %413 = vrot.lane.b32.xlu0 %v408, 108
      %v414 = vpop.permute.xlu0 %413
      %vm415 = vcmask 883712
      %v416 = vsel %vm415, %v410, %v412
      %v417 = vsel %vm415, %v412, %v414
      %421 = vst [vmem:[#allocation2 + $0x30] sm:$0xf0] %v416
      %422 = vst [vmem:[#allocation2 + $0x38] sm:$0xf0] %v417
      %423 = vst.msk [vmem:[#allocation2 + $0x40] sm:$0xf0] %vm320, %v414
      %v424 = vld [vmem:[%s261] sm:$0xff]
      %v425 = vld [vmem:[%s261 + $0x8] sm:$0xf]
      %428 = vst [vmem:[#allocation1] ss:$2 sm:$0xff] %v424
      %s429 = scalar_lea.vmem [#allocation1], 16
      %430 = vst [vmem:[%s429] ss:$2 sm:$0xff] %v425
      %v431 = vld.sshfl [vmem:[#allocation1] sm:$0xff pattern:$0x75316420]
      %v432 = vld.sshfl [vmem:[#allocation1 + $0x8] sm:$0xff pattern:$0x75316420]
      %v433 = vld.sshfl [vmem:[#allocation1 + $0x10] sm:$0xff pattern:$0x75316420]
      %434 = vrot.lane.b32.xlu0 %v431, 92
      %v435 = vpop.permute.xlu0 %434
      %436 = vrot.lane.b32.xlu0 %v432, 92
      %v437 = vpop.permute.xlu0 %436
      %438 = vrot.lane.b32.xlu0 %v433, 92
      %v439 = vpop.permute.xlu0 %438
      %vm440 = vcmask 752640
      %v441 = vsel %vm440, %v435, %v437
      %v442 = vsel %vm440, %v437, %v439
      %446 = vst [vmem:[#allocation2 + $0x48] sm:$0xf] %v441
      %447 = vst [vmem:[#allocation2 + $0x50] sm:$0xf] %v442
      %448 = vst.msk [vmem:[#allocation2 + $0x58] sm:$0xf] %vm293, %v439
      %v449 = vld [vmem:[%s261] sm:$0xff]
      %v450 = vld [vmem:[%s261 + $0x8] sm:$0xf]
      %s453 = scalar_lea.vmem [#allocation1], 1
      %454 = vst [vmem:[%s453] ss:$2 sm:$0xff] %v449
      %s455 = scalar_lea.vmem [#allocation1], 17
      %456 = vst [vmem:[%s455] ss:$2 sm:$0xff] %v450
      %v457 = vld.sshfl [vmem:[#allocation1] sm:$0xff pattern:$0x75316420]
      %v458 = vld.sshfl [vmem:[#allocation1 + $0x8] sm:$0xff pattern:$0x75316420]
      %v459 = vld.sshfl [vmem:[#allocation1 + $0x10] sm:$0xff pattern:$0x75316420]
      %460 = vrot.lane.b32.xlu0 %v457, 91
      %v461 = vpop.permute.xlu0 %460
      %462 = vrot.lane.b32.xlu0 %v458, 91
      %v463 = vpop.permute.xlu0 %462
      %464 = vrot.lane.b32.xlu0 %v459, 91
      %v465 = vpop.permute.xlu0 %464
      %vm466 = vcmask 744448
      %v467 = vsel %vm466, %v461, %v463
      %v468 = vsel %vm466, %v463, %v465
      %472 = vst [vmem:[#allocation2 + $0x48] sm:$0xf0] %v467
      %473 = vst [vmem:[#allocation2 + $0x50] sm:$0xf0] %v468
      %474 = vst.msk [vmem:[#allocation2 + $0x58] sm:$0xf0] %vm320, %v465
      %v475 = vld [vmem:[%s261] sm:$0xff]
      %v476 = vld [vmem:[%s261 + $0x8] sm:$0xf]
      %479 = vst [vmem:[#allocation1] ss:$2 sm:$0xff] %v475
      %s480 = scalar_lea.vmem [#allocation1], 16
      %481 = vst [vmem:[%s480] ss:$2 sm:$0xff] %v476
      %v482 = vld.sshfl [vmem:[#allocation1] sm:$0xff pattern:$0x75316420]
      %v483 = vld.sshfl [vmem:[#allocation1 + $0x8] sm:$0xff pattern:$0x75316420]
      %v484 = vld.sshfl [vmem:[#allocation1 + $0x10] sm:$0xff pattern:$0x75316420]
      %485 = vrot.lane.b32.xlu0 %v482, 90
      %v486 = vpop.permute.xlu0 %485
      %487 = vrot.lane.b32.xlu0 %v483, 90
      %v488 = vpop.permute.xlu0 %487
      %489 = vrot.lane.b32.xlu0 %v484, 90
      %v490 = vpop.permute.xlu0 %489
      %vm491 = vcmask 736256
      %v492 = vsel %vm491, %v486, %v488
      %v493 = vsel %vm491, %v488, %v490
      %497 = vst [vmem:[#allocation2 + $0x60] sm:$0xf] %v492
      %498 = vst [vmem:[#allocation2 + $0x68] sm:$0xf] %v493
      %499 = vst.msk [vmem:[#allocation2 + $0x70] sm:$0xf] %vm293, %v490
      %v500 = vld [vmem:[%s1] sm:$0xf]
      %v501 = vld [vmem:[%s1 + $0x4] sm:$0xf]
      %v502 = vld [vmem:[%s1 + $0x8] sm:$0xf]
      %v503 = vld [vmem:[%s1 + $0xc] sm:$0xf]
      %v504 = vld [vmem:[%s1 + $0x10] sm:$0xf]
      %v505 = vld [vmem:[#allocation2] sm:$0xff]
      %v506 = vld [vmem:[#allocation2 + $0x8] sm:$0xff]
      %v507 = vld [vmem:[#allocation2 + $0x10] sm:$0xff]
      %v508 = vld [vmem:[#allocation2 + $0x18] sm:$0xff]
      %v509 = vld [vmem:[#allocation2 + $0x20] sm:$0xff]
      %v510 = vld [vmem:[#allocation2 + $0x28] sm:$0xff]
      %v511 = vld [vmem:[#allocation2 + $0x30] sm:$0xff]
      %v512 = vld [vmem:[#allocation2 + $0x38] sm:$0xff]
      %v513 = vld [vmem:[#allocation2 + $0x40] sm:$0xff]
      %v514 = vld [vmem:[#allocation2 + $0x48] sm:$0xff]
      %v515 = vld [vmem:[#allocation2 + $0x50] sm:$0xff]
      %v516 = vld [vmem:[#allocation2 + $0x58] sm:$0xff]
      %v517 = vld [vmem:[#allocation2 + $0x60] sm:$0xf]
      %v518 = vld [vmem:[#allocation2 + $0x68] sm:$0xf]
      %v519 = vld [vmem:[#allocation2 + $0x70] sm:$0xf]
      %v520 = vpack.c.bf16 %v508, %v505
      %v521 = vpack.c.bf16 %v509, %v506
      %v522 = vpack.c.bf16 %v510, %v507
      %v523 = vpack.c.bf16 %v514, %v511
      %v524 = vpack.c.bf16 %v515, %v512
      %v525 = vpack.c.bf16 %v516, %v513
      %v526 = vpack.c.bf16 %v517, %v517
      %v527 = vpack.c.bf16 %v518, %v518
      %v528 = vpack.c.bf16 %v519, %v519
      %v534 = vunpack.c.l.b16 %v500
      %v535 = vunpack.c.l.b16 %v501
      %v536 = vunpack.c.l.b16 %v502
      %v537 = vunpack.c.l.b16 %v503
      %v538 = vunpack.c.l.b16 %v504
      %v539 = vpack.c.b16 %v535, %v534
      %v540 = vpack.c.b16 %v537, %v536
      %v541 = vpack.c.b16 %v538, %v538
      %vm542 = vcmask 293888
      %v544 = vsel %vm542, %v539, 0
      %v547 = vsel %vm542, %v540, 0
      %v550 = vsel %vm542, %v541, 0
      %vm552 = vcmask 1041408
      %v554 = vsel %vm552, %v526, 0
      %v557 = vsel %vm552, %v527, 0
      %v560 = vsel %vm552, %v528, 0
      %562 = vmatpush.bf16.msra.mxu0 0
      %563 = vmatpush.bf16.msra.mxu0 0
      %564 = vmatpush.bf16.msra.mxu0 0
      %565 = vmatpush.bf16.msra.mxu0 0
      %566 = vmatpush.bf16.msra.mxu0 0
      %567 = vmatpush.bf16.msra.mxu0 %v554
      %568 = vmatpush.bf16.msra.mxu0 %v523
      %569 = vmatpush.bf16.msra.mxu0 %v520
      %570 = vmatmul.bf16.gmra.mxu0 %v544
      %v571 = vpop.f32.mrf.mxu0
      %v572 = vadd.f32 0.0, %v571
      %v573 = vpop.f32.mrf.mxu0
      %v574 = vadd.f32 0.0, %v573
      %575 = vmatmul.bf16.gmra.mxu0 %v547
      %v576 = vpop.f32.mrf.mxu0
      %v577 = vadd.f32 0.0, %v576
      %v578 = vpop.f32.mrf.mxu0
      %v579 = vadd.f32 0.0, %v578
      %580 = vmatmul.bf16.gmra.mxu0 %v550
      %v581 = vpop.f32.mrf.mxu0
      %v582 = vadd.f32 0.0, %v581
      %v583 = vpop.f32.mrf.mxu0
      %584 = vdwg.mxu0
      %585 = vmatpush.bf16.msra.mxu0 0
      %586 = vmatpush.bf16.msra.mxu0 0
      %587 = vmatpush.bf16.msra.mxu0 0
      %588 = vmatpush.bf16.msra.mxu0 0
      %589 = vmatpush.bf16.msra.mxu0 0
      %590 = vmatpush.bf16.msra.mxu0 %v557
      %591 = vmatpush.bf16.msra.mxu0 %v524
      %592 = vmatpush.bf16.msra.mxu0 %v521
      %593 = vmatmul.bf16.gmra.mxu0 %v544
      %v594 = vpop.f32.mrf.mxu0
      %v595 = vadd.f32 0.0, %v594
      %v596 = vpop.f32.mrf.mxu0
      %v597 = vadd.f32 0.0, %v596
      %598 = vmatmul.bf16.gmra.mxu0 %v547
      %v599 = vpop.f32.mrf.mxu0
      %v600 = vadd.f32 0.0, %v599
      %v601 = vpop.f32.mrf.mxu0
      %v602 = vadd.f32 0.0, %v601
      %603 = vmatmul.bf16.gmra.mxu0 %v550
      %v604 = vpop.f32.mrf.mxu0
      %v605 = vadd.f32 0.0, %v604
      %v606 = vpop.f32.mrf.mxu0
      %607 = vdwg.mxu0
      %608 = vmatpush.bf16.msra.mxu0 0
      %609 = vmatpush.bf16.msra.mxu0 0
      %610 = vmatpush.bf16.msra.mxu0 0
      %611 = vmatpush.bf16.msra.mxu0 0
      %612 = vmatpush.bf16.msra.mxu0 0
      %613 = vmatpush.bf16.msra.mxu0 %v560
      %614 = vmatpush.bf16.msra.mxu0 %v525
      %615 = vmatpush.bf16.msra.mxu0 %v522
      %616 = vmatmul.bf16.gmra.mxu0 %v544
      %v617 = vpop.f32.mrf.mxu0
      %v618 = vadd.f32 0.0, %v617
      %v619 = vpop.f32.mrf.mxu0
      %v620 = vadd.f32 0.0, %v619
      %621 = vmatmul.bf16.gmra.mxu0 %v547
      %v622 = vpop.f32.mrf.mxu0
      %v623 = vadd.f32 0.0, %v622
      %v624 = vpop.f32.mrf.mxu0
      %v625 = vadd.f32 0.0, %v624
      %626 = vmatmul.bf16.gmra.mxu0 %v550
      %v627 = vpop.f32.mrf.mxu0
      %v628 = vadd.f32 0.0, %v627
      %v629 = vpop.f32.mrf.mxu0
      %630 = vdwg.mxu0
      %v631 = vld [vmem:[%s2] sm:$0xff]
      %v632 = vld [vmem:[%s2 + $0x8] sm:$0xff]
      %v633 = vld [vmem:[%s2 + $0x10] sm:$0xff]
      %v634 = vld [vmem:[%s2 + $0x18] sm:$0xff]
      %v635 = vld [vmem:[%s2 + $0x20] sm:$0xff]
      %637 = vset.pattern.permute.xlu0 0
      %638 = vperm.xlu0 %637, %v631
      %v639 = vpop.permute.xlu0 %638
      %642 = vset.pattern.permute.xlu0 0
      %643 = vperm.xlu0 %642, %v632
      %v644 = vpop.permute.xlu0 %643
      %647 = vset.pattern.permute.xlu0 0
      %648 = vperm.xlu0 %647, %v633
      %v649 = vpop.permute.xlu0 %648
      %v651 = vadd.f32 %v572, %v639
      %v652 = vadd.f32 %v595, %v639
      %v653 = vadd.f32 %v618, %v639
      %v654 = vadd.f32 %v574, %v644
      %v655 = vadd.f32 %v597, %v644
      %v656 = vadd.f32 %v620, %v644
      %v657 = vadd.f32 %v577, %v649
      %v658 = vadd.f32 %v600, %v649
      %v659 = vadd.f32 %v623, %v649
      %v660 = vpack.c.bf16 %v652, %v651
      %v661 = vpack.c.bf16 %v653, %v653
      %662 = vst [vmem:[%s266] sm:$0xff] %v660
      %663 = vst.msk [vmem:[%s266 + $0x8] sm:$0xf] %vm293, %v661
      %v664 = vpack.c.bf16 %v655, %v654
      %v665 = vpack.c.bf16 %v656, %v656
      %v666 = vpack.c.bf16 %v658, %v657
      %v667 = vpack.c.bf16 %v659, %v659
      %668 = vst [vmem:[%s271] sm:$0xff] %v664
      %669 = vst.msk [vmem:[%s271 + $0x8] sm:$0xf] %vm293, %v665
      %670 = vst [vmem:[%s271 + $0xc] sm:$0xff] %v666
      %671 = vst.msk [vmem:[%s271 + $0x14] sm:$0xf] %vm293, %v667
      %v672 = vld [vmem:[%s3] sm:$0xff]
      %v673 = vld [vmem:[%s3 + $0x8] sm:$0xff]
      %v674 = vld [vmem:[%s3 + $0x10] sm:$0xff]
      %v675 = vld [vmem:[%s3 + $0x18] sm:$0xff]
      %v676 = vld [vmem:[%s3 + $0x20] sm:$0xff]
      %v677 = vld [vmem:[%s3 + $0x28] sm:$0xff]
      %v678 = vmul.f32 %v579, %v672
      %v679 = vmul.f32 %v602, %v673
      %v680 = vmul.f32 %v625, %v674
      %v681 = vmul.f32 %v582, %v675
      %v682 = vmul.f32 %v605, %v676
      %v683 = vmul.f32 %v628, %v677
      %685 = vset.pattern.permute.xlu0 0
      %686 = vperm.xlu0 %685, %v634
      %v687 = vpop.permute.xlu0 %686
      %690 = vset.pattern.permute.xlu0 0
      %691 = vperm.xlu0 %690, %v635
      %v692 = vpop.permute.xlu0 %691
      %v694 = vadd.f32 %v678, %v687
      %v695 = vadd.f32 %v679, %v687
      %v696 = vadd.f32 %v680, %v687
      %v697 = vadd.f32 %v681, %v692
      %v698 = vadd.f32 %v682, %v692
      %v699 = vadd.f32 %v683, %v692
      %v700 = vpack.c.bf16 %v695, %v694
      %v701 = vpack.c.bf16 %v696, %v696
      %v702 = vpack.c.bf16 %v698, %v697
      %v703 = vpack.c.bf16 %v699, %v699
      %704 = vst [vmem:[%s276] sm:$0xff] %v700
      %705 = vst.msk [vmem:[%s276 + $0x8] sm:$0xf] %vm293, %v701
      %706 = vst [vmem:[%s276 + $0xc] sm:$0xff] %v702
      %707 = vst.msk [vmem:[%s276 + $0x14] sm:$0xf] %vm293, %v703
      %p708 = scmp.lt.s32.totalorder %s18, 1
      %s709 = scalar_select %p708, %s18, 1
      %s710 = smul.addr %s709, 3
      %s711 = smul.addr %s710, 4
      %s712 = scalar_lea.vmem %s4, %s711
      %p713 = scmp.lt.s32.totalorder %s18, 1
      %s714 = scalar_select %p713, %s18, 1
      %s715 = smul.addr %s714, 6
      %s716 = smul.addr %s715, 4
      %s717 = scalar_lea.vmem %s5, %s716
      %p718 = scmp.lt.s32.totalorder %s18, 1
      %s719 = scalar_select %p718, %s18, 1
      %s720 = smul.addr %s719, 6
      %s721 = smul.addr %s720, 4
      %s722 = scalar_lea.vmem %s6, %s721
      // Predicated region
      $region37: #{_forward_impl.1} parent=35 // pred_check
        %p723 = pneg %p125
      $region38: #{_forward_impl.1} parent=35 // pred_check_branch
        %725 = sbr.rel (%p723) target = $region40
      $region39: #{_forward_impl.1} parent=35 // pred_region
        _
      $region40: #{_forward_impl.1} parent=35 // pred_fallthru
        _
      // Predicated region
      $region41: #{_forward_impl.1} parent=35 // pred_check
        %p726 = pneg %p151
      $region42: #{_forward_impl.1} parent=35 // pred_check_branch
        %728 = sbr.rel (%p726) target = $region44
      $region43: #{_forward_impl.1} parent=35 // pred_region
        _
      $region44: #{_forward_impl.1} parent=35 // pred_fallthru
        _
      // Predicated region
      $region45: #{_forward_impl.1} parent=35 // pred_check
        %p729 = pneg %p177
      $region46: #{_forward_impl.1} parent=35 // pred_check_branch
        %731 = sbr.rel (%p729) target = $region48
      $region47: #{_forward_impl.1} parent=35 // pred_region
        _
      $region48: #{_forward_impl.1} parent=35 // pred_fallthru
        _
    $region36: #{_forward_impl.1} parent=5 // pred_fallthru
      _
    %p732 = scmp.le.s32.totalorder 2, %s13
    // Predicated region
    $region49: #{_forward_impl.1} parent=5 // pred_check
      %p733 = pneg %p732
    $region50: #{_forward_impl.1} parent=5 // pred_check_branch
      %735 = sbr.rel (%p733) target = $region52
    $region51: #{_forward_impl.1} parent=5 // pred_region
      %s736 = ssub.s32 %s13, 2
      // Predicated region
      $region53: #{_forward_impl.1} parent=51 // pred_check
        %p737 = pneg %p131
      $region54: #{_forward_impl.1} parent=51 // pred_check_branch
        %739 = sbr.rel (%p737) target = $region56
      $region55: #{_forward_impl.1} parent=51 // pred_region
        %p740 = scmp.lt.s32.totalorder %s19, 1
        %s741 = scalar_select %p740, %s19, 1
        %s742 = smul.addr %s741, 3
        %s743 = smul.addr %s742, 4
        %s744 = scalar_lea.vmem %s4, %s743
      $region56: #{_forward_impl.1} parent=51 // pred_fallthru
        _
      // Predicated region
      $region57: #{_forward_impl.1} parent=51 // pred_check
        %p745 = pneg %p157
      $region58: #{_forward_impl.1} parent=51 // pred_check_branch
        %747 = sbr.rel (%p745) target = $region60
      $region59: #{_forward_impl.1} parent=51 // pred_region
        %p748 = scmp.lt.s32.totalorder %s19, 1
        %s749 = scalar_select %p748, %s19, 1
        %s750 = smul.addr %s749, 6
        %s751 = smul.addr %s750, 4
        %s752 = scalar_lea.vmem %s5, %s751
      $region60: #{_forward_impl.1} parent=51 // pred_fallthru
        _
      // Predicated region
      $region61: #{_forward_impl.1} parent=51 // pred_check
        %p753 = pneg %p183
      $region62: #{_forward_impl.1} parent=51 // pred_check_branch
        %755 = sbr.rel (%p753) target = $region64
      $region63: #{_forward_impl.1} parent=51 // pred_region
        %p756 = scmp.lt.s32.totalorder %s19, 1
        %s757 = scalar_select %p756, %s19, 1
        %s758 = smul.addr %s757, 6
        %s759 = smul.addr %s758, 4
        %s760 = scalar_lea.vmem %s6, %s759
      $region64: #{_forward_impl.1} parent=51 // pred_fallthru
        _
    $region52: #{_forward_impl.1} parent=5 // pred_fallthru
      _
  $region6: #{_forward_impl.1} parent=0 // loop_footer
    %s17 = sadd.s32 1, %s13
  $region7: #{_forward_impl.1} parent=0 // loop_footer_branch
    %12 = sbr.rel target = $region3
  $region8: #{_forward_impl.1} parent=0 // loop_exit
    _

</llo_original>
